<compile_context>
chip_gen: v5e
topology: v5e:2x2
jax: 0.10.0
libtpu: 0.0.40
codegen_flags: <defaults>
</compile_context>

<pallas_src>
import math

import jax
import jax.numpy as jnp
from jax.experimental import pallas as pl
from jax.experimental.pallas import tpu as pltpu

TO_BIT = 8
MULT_BIT = 16
QN = -(2 ** (TO_BIT - 1))          # signed_minmax(8) -> (-128, 127)
QP = 2 ** (TO_BIT - 1) - 1

LANES = 1024                       # lane-dense fallback width (8 x 128)
MAX_ROW_BLOCK = 512                # 512 x 1024 f32 = 2 MiB per buffer
TARGET_BLOCK_BYTES = 2 * 1024 * 1024
MIN_BLOCK_BYTES = 512 * 1024       # keep blocks big enough to amortize grid overhead


def _round_up(x, m):
    return (x + m - 1) // m * m


# ------------------------------------------------------------------ kernels --
def _abs_sum_kernel(x_ref, out_ref):
    """Accumulate sum(|x|) across the whole activation (LSQ observer statistic)."""
    @pl.when(pl.program_id(0) == 0)
    def _():
        out_ref[...] = jnp.zeros_like(out_ref)
    out_ref[...] += jnp.sum(jnp.abs(x_ref[...].astype(jnp.float32)),
                            axis=(0, 1), keepdims=True)


def _quant_kernel(params_ref, x_ref, o_ref):
    """o = clamp(round(x * inv), Qn, Qp) * scale, with inv = 1 / (a_s * s)."""
    inv = params_ref[0]
    scale = params_ref[1]
    x = x_ref[...].astype(jnp.float32)                       # f32 in-register compute
    q = jnp.clip(jnp.round(x * inv), float(QN), float(QP))
    o_ref[...] = (q * scale).astype(o_ref.dtype)             # native-dtype store


# ----------------------------------------------------------------- wrappers --
def _abs_sum(x2d, row_block):
    rows, cols = x2d.shape
    grid = rows // row_block
    out = pl.pallas_call(
        _abs_sum_kernel,
        out_shape=jax.ShapeDtypeStruct((1, 1), jnp.float32),
        grid=(grid,),
        in_specs=[pl.BlockSpec((row_block, cols), lambda i: (i, 0))],
        out_specs=pl.BlockSpec((1, 1), lambda i: (0, 0)),
        compiler_params=pltpu.CompilerParams(
            dimension_semantics=("arbitrary",)),     # resident accumulator
    )(x2d)
    return out[0, 0]


def _quantize(params, x2d, row_block):
    rows, cols = x2d.shape
    grid = rows // row_block
    return pl.pallas_call(
        _quant_kernel,
        out_shape=jax.ShapeDtypeStruct((rows, cols), x2d.dtype),
        grid=(grid,),
        in_specs=[
            pl.BlockSpec(memory_space=pltpu.MemorySpace.SMEM),   # [inv, scale]
            pl.BlockSpec((row_block, cols), lambda i: (i, 0)),
        ],
        out_specs=pl.BlockSpec((row_block, cols), lambda i: (i, 0)),
        compiler_params=pltpu.CompilerParams(
            dimension_semantics=("parallel",)),      # megacore shards row tiles
    )(params, x2d)


# -------------------------------------------------------------- host helpers --
def _pick_row_block(rows, cols):
    """Row block (multiple of 8, or == rows) that divides `rows` exactly and keeps
    one f32 block within ~TARGET_BLOCK_BYTES.  Returns None if no good tiling."""
    budget = max(8, (TARGET_BLOCK_BYTES // (cols * 4)) // 8 * 8)
    if rows <= budget:
        return rows                                  # single full-dim block
    if rows % 8:
        return None
    min_rows = max(8, _round_up(-(-MIN_BLOCK_BYTES // (cols * 4)), 8))
    for blk in range(budget, min_rows - 1, -8):
        if rows % blk == 0:
            return blk
    return None


def _dyadic_scale(scale, mult_bit):
    """mult / 2**shift ~= 1/scale with a mult_bit-wide integer `mult`.
    Returns the dyadic approximation s = 2**shift / mult of `scale`."""
    mantissa, e = jnp.frexp(1.0 / scale)             # 1/scale = mantissa * 2**e
    mult = jnp.round(mantissa * (2.0 ** mult_bit))
    shift = mult_bit - e
    s = jnp.exp2(shift.astype(jnp.float32)) / mult
    return s, (mult, shift)


def qact_forward(x, a_s=None):
    """Training-mode LSQ activation fake-quantization (first calibration step)."""
    if a_s is None:
        a_s = 1.0
    a_s = jnp.float32(a_s)

    orig_shape = x.shape
    orig_dtype = x.dtype
    total = x.size

    # ---- choose a lane-friendly 2-D view -------------------------------------
    row_block = None
    padded = False
    if x.ndim >= 2 and 128 <= orig_shape[-1] <= TARGET_BLOCK_BYTES // 32:
        lead, cols = total // orig_shape[-1], orig_shape[-1]
        row_block = _pick_row_block(lead, cols)
        if row_block is not None:
            x2d = x.reshape(lead, cols)              # free reshape, zero extra copies
    if row_block is None:
        # Fallback: flatten onto 1024 lanes and zero-pad the tail (one extra copy;
        # zeros do not perturb sum(|x|), padded outputs are sliced away).
        rows = -(-total // LANES)
        row_block = min(MAX_ROW_BLOCK, _round_up(rows, 8))
        rows_padded = _round_up(rows, row_block)
        x_flat = x.reshape(-1)                       # keep native dtype on the wire
        pad = rows_padded * LANES - total
        if pad:
            x_flat = jnp.pad(x_flat, (0, pad))
        x2d = x_flat.reshape(rows_padded, LANES)
        padded = True

    # ---- pass 1: LSQ observer (counter == 0): scale = 2 * mean(|x|) / sqrt(Qp)
    abs_sum = _abs_sum(x2d, row_block)
    scale = 2.0 * (abs_sum / total) / math.sqrt(QP)
    scale = jnp.maximum(scale, jnp.float32(1e-12))   # guard all-zero input
    # TODO(synk): momentum-EMA calibration across calls, the observer's counter /
    # calibrate_count bookkeeping, its debug print (std/mean over nonzero elems),
    # and grad_scale / round_pass STE tricks are training-state / backward-only
    # behaviour with no effect on this single forward pass.

    # ---- dyadic requantization constants -------------------------------------
    s, (mult, shift) = _dyadic_scale(scale / a_s, MULT_BIT)

    # ---- pass 2: fake-quantize ------------------------------------------------
    inv = 1.0 / (a_s * s)                            # one multiply on the hot path
    params = jnp.stack([inv, scale]).astype(jnp.float32)
    out2d = _quantize(params, x2d, row_block)

    if padded:
        out = out2d.reshape(-1)[:total].reshape(orig_shape)
    else:
        out = out2d.reshape(orig_shape)
    return out.astype(orig_dtype), scale, (mult, shift, s)


# ----------------------------------------------------------------------- main --
if __name__ == "__main__":
    def reference(x, scale, s, a_s=1.0):
        inv = 1.0 / (a_s * s)
        x_round = jnp.clip(jnp.round(x.astype(jnp.float32) * inv), QN, QP)
        return x_round * scale

    # 1) Small DeiT-style activation with an odd last dim -> padded lane-dense path.
    x1 = jax.random.normal(jax.random.PRNGKey(0), (2, 8, 32), dtype=jnp.float32)
    out1, scale1, (mult1, shift1, s1) = qact_forward(x1)
    jax.block_until_ready(out1)
    scale1_ref = 2.0 * jnp.mean(jnp.abs(x1)) / math.sqrt(QP)
    assert out1.shape == x1.shape and out1.dtype == x1.dtype
    assert jnp.allclose(scale1, scale1_ref, rtol=1e-4), "scale mismatch (pad path)"
    assert jnp.allclose(out1, reference(x1, scale1, s1), rtol=1e-5, atol=1e-6), \
        "output mismatch (pad path)"

    # 2) Lane-friendly last dim with native bf16 I/O -> zero-copy path, grid of 1.
    x2 = jax.random.normal(jax.random.PRNGKey(1), (2, 8, 128), dtype=jnp.bfloat16)
    out2, scale2, (_, _, s2) = qact_forward(x2)
    jax.block_until_ready(out2)
    assert out2.dtype == jnp.bfloat16 and out2.shape == x2.shape
    assert jnp.allclose(out2.astype(jnp.float32), reference(x2, scale2, s2),
                        rtol=5e-2, atol=5e-2), "output mismatch (bf16 path)"

    # 3) DeiT-small-sized activation -> zero-copy path with a multi-block grid
    #    (exercises the resident accumulator and megacore-parallel quant pass).
    x3 = jax.random.normal(jax.random.PRNGKey(2), (2, 1024, 384), dtype=jnp.float32)
    out3, scale3, (_, _, s3) = qact_forward(x3)
    jax.block_until_ready(out3)
    scale3_ref = 2.0 * jnp.mean(jnp.abs(x3)) / math.sqrt(QP)
    assert jnp.allclose(scale3, scale3_ref, rtol=1e-4), "scale mismatch (multi-block)"
    assert jnp.allclose(out3, reference(x3, scale3, s3), rtol=1e-5, atol=1e-6), \
        "output mismatch (multi-block)"

    print("KERNEL_OK")
</pallas_src>

<mosaic_0001>
module attributes {stable_mosaic.version = 11 : i64} {
  func.func @_abs_sum_kernel(%arg0: i32, %arg1: memref<8x1024xf32, #tpu.memory_space<vmem>>, %arg2: memref<1x1xf32, #tpu.memory_space<vmem>>) attributes {dimension_semantics = [#tpu.dimension_semantics<arbitrary>], iteration_bounds = array<i64: 1>, scalar_prefetch = 0 : i64, scratch_operands = 0 : i64, tpu.core_type = #tpu.core_type<tc>, window_params = [{transform_indices = @transform_0, window_bounds = array<i64: 8, 1024>}, {pipeline_mode = #tpu.pipeline_mode<synchronous>, transform_indices = @transform_1, window_bounds = array<i64: 1, 1>}]} {
    %c0_i32 = arith.constant 0 : i32
    %0 = arith.cmpi eq, %arg0, %c0_i32 : i32
    %1 = arith.extui %0 : i1 to i32
    %c0_i32_0 = arith.constant 0 : i32
    %2 = arith.cmpi ne, %1, %c0_i32_0 : i32
    scf.if %2 {
      %cst_6 = arith.constant 0.000000e+00 : f32
      %13 = vector.broadcast %cst_6 : f32 to vector<1x1xf32>
      %c0_7 = arith.constant 0 : index
      %c0_8 = arith.constant 0 : index
      %14 = vector.load %arg2[%c0_7, %c0_8] : memref<1x1xf32, #tpu.memory_space<vmem>>, vector<1x1xf32>
      tpu.vector_store %arg2[%c0_7, %c0_8], %13 {strides = array<i32>} : memref<1x1xf32, #tpu.memory_space<vmem>>, vector<1x1xf32>,
    } else {
    }
    %c0 = arith.constant 0 : index
    %c0_1 = arith.constant 0 : index
    %3 = vector.load %arg2[%c0, %c0_1] : memref<1x1xf32, #tpu.memory_space<vmem>>, vector<1x1xf32>
    %c0_2 = arith.constant 0 : index
    %c0_3 = arith.constant 0 : index
    %4 = vector.load %arg1[%c0_2, %c0_3] : memref<8x1024xf32, #tpu.memory_space<vmem>>, vector<8x1024xf32>
    %5 = math.absf %4 : vector<8x1024xf32>
    %6 = vector.shape_cast %5 : vector<8x1024xf32> to vector<1x8x1024xf32>
    %cst = arith.constant dense<0.000000e+00> : vector<1xf32>
    %7 = vector.multi_reduction <add>, %6, %cst [1, 2] : vector<1x8x1024xf32> to vector<1xf32>
    %8 = vector.shape_cast %7 : vector<1xf32> to vector<1x1x1xf32>
    %9 = vector.extract %8[0, 0, 0] : f32 from vector<1x1x1xf32>
    %10 = vector.broadcast %9 : f32 to vector<1x1xf32>
    %11 = arith.addf %3, %10 : vector<1x1xf32>
    %c0_4 = arith.constant 0 : index
    %c0_5 = arith.constant 0 : index
    %12 = vector.load %arg2[%c0_4, %c0_5] : memref<1x1xf32, #tpu.memory_space<vmem>>, vector<1x1xf32>
    tpu.vector_store %arg2[%c0_4, %c0_5], %11 {strides = array<i32>} : memref<1x1xf32, #tpu.memory_space<vmem>>, vector<1x1xf32>,
    return
  }
  func.func @transform_0(%arg0: i32) -> (i32, i32) {
    %c0_i32 = arith.constant 0 : i32
    %c0_i32_0 = arith.constant 0 : i32
    return %arg0, %c0_i32 : i32, i32
  }
  func.func @transform_1(%arg0: i32) -> (i32, i32) {
    %c0_i32 = arith.constant 0 : i32
    %c0_i32_0 = arith.constant 0 : i32
    %c0_i32_1 = arith.constant 0 : i32
    return %c0_i32, %c0_i32_0 : i32, i32
  }
}

</mosaic_0001>

<llo_original>
// kernel: tpu_custom_call.1
$region0: #{tpu_custom_call.1}
  #allocation0 [shape = 'u32[]', space=smem, size = 0x4, offset = 0x4, fixed_abs, tag = 'smem constant byte address 0x4 - core index']
  #allocation1 [shape = 'u32[72,128]{1,0:T(1,128)}', space=vmem, size = 0x9000, scoped, tag = 'internal scratch']
  %s0 = inlined_call_operand.hbm [shape: f32[8,1024], index: 0, kind: input, shape index: {}]
  %s1 = inlined_call_operand.hbm [shape: f32[1,1], index: 1, kind: output, shape index: {}]
  %s2 = sld [smem:[#allocation0]]
  $region22: #{tpu_custom_call.1} parent=0
    _
  %s4 = ssub.s32 1, %s2
  %s5 = scalar_select 0, %s4, %s2
  $region1: #{tpu_custom_call.1} parent=0
    #allocation2 [shape = 'u8[32768]{0}', space=vmem, size = 0x8000, scoped, tag = 'input window, operand 0, single buffered']
    #allocation3 [shape = 's32[1]{0}', space=sflag, size = 0x4, scoped, tag = 'scoped memory for tpu_custom_call.1']
    #allocation4 [shape = 's32[1]{0}', space=sflag, size = 0x4, scoped, tag = 'scoped memory for tpu_custom_call.1']
    #allocation5 [shape = 'u8[512]{0}', space=vmem, size = 0x400, scoped, tag = 'output window, operand 0, single buffered']
    %6 = vsyncpa [#allocation3], 0
    %7 = vsyncpa [#allocation4], 0
    // Predicated region
    $region2: #{tpu_custom_call.1} parent=1 // pred_check
      _
    $region3: #{tpu_custom_call.1} parent=1 // pred_check_branch
      %9 = sbr.rel (0) target = $region5
    $region4: #{tpu_custom_call.1} parent=1 // pred_region
      %11 = vsyncadd [#allocation3], 0
      %s13 = sshll.u32 %s0, 4
      %s14 = int_to_ptr.hbm [resolvable:$true] %s13
      %s15 = sshll.u32 [#allocation2], 4
      %s16 = int_to_ptr.vmem [resolvable:$true] %s15
      %18 = dma.hbm_to_vmem [thread:$0]  %s14, 1024, %s16, [#allocation3]
    $region5: #{tpu_custom_call.1} parent=1 // pred_fallthru
      _
    // Predicated region
    $region6: #{tpu_custom_call.1} parent=1 // pred_check
      _
    $region7: #{tpu_custom_call.1} parent=1 // pred_check_branch
      %20 = sbr.rel (0) target = $region9
    $region8: #{tpu_custom_call.1} parent=1 // pred_region
      %22 = dma.done [#allocation3], 1024
    $region9: #{tpu_custom_call.1} parent=1 // pred_fallthru
      _
    %p23 = scmp.eq.s32.totalorder 0, 0
    // Predicated region
    $region10: #{tpu_custom_call.1} parent=1 // pred_check
      %p24 = pneg %p23
    $region11: #{tpu_custom_call.1} parent=1 // pred_check_branch
      %26 = sbr.rel (%p24) target = $region13
    $region12: #{tpu_custom_call.1} parent=1 // pred_region
      %vm27 = vcmask 0
      %28 = vst.msk [vmem:[#allocation5] sm:$0x1] %vm27, 0.0
    $region13: #{tpu_custom_call.1} parent=1 // pred_fallthru
      _
    %v29 = vld [vmem:[#allocation5] sm:$0x1]
    %v30 = vld [vmem:[#allocation2] sm:$0xff]
    %v31 = vld [vmem:[#allocation2 + $0x8] sm:$0xff]
    %v32 = vld [vmem:[#allocation2 + $0x10] sm:$0xff]
    %v33 = vld [vmem:[#allocation2 + $0x18] sm:$0xff]
    %v34 = vld [vmem:[#allocation2 + $0x20] sm:$0xff]
    %v35 = vld [vmem:[#allocation2 + $0x28] sm:$0xff]
    %v36 = vld [vmem:[#allocation2 + $0x30] sm:$0xff]
    %v37 = vld [vmem:[#allocation2 + $0x38] sm:$0xff]
    %v38 = vand.u32 2147483647, %v30
    %v39 = vand.u32 2147483647, %v31
    %v40 = vand.u32 2147483647, %v32
    %v41 = vand.u32 2147483647, %v33
    %v42 = vand.u32 2147483647, %v34
    %v43 = vand.u32 2147483647, %v35
    %v44 = vand.u32 2147483647, %v36
    %v45 = vand.u32 2147483647, %v37
    %v46 = vadd.f32 %v38, %v39
    %v47 = vadd.f32 %v46, %v40
    %v48 = vadd.f32 %v47, %v41
    %v49 = vadd.f32 %v48, %v42
    %v50 = vadd.f32 %v49, %v43
    %v51 = vadd.f32 %v50, %v44
    %v52 = vadd.f32 %v51, %v45
    %53 = vadd.xlane.f32.xlu0 %v52
    %v54 = vpop.xlane.xlu0 %53
    %v55 = vrot.slane %v54, 4
    %v56 = vadd.f32 %v54, %v55
    %v57 = vrot.slane %v56, 2
    %v58 = vadd.f32 %v56, %v57
    %v59 = vrot.slane %v58, 1
    %v60 = vadd.f32 %v58, %v59
    %s61 = vtos %v60
    %v62 = vstv %s61
    %v63 = vadd.f32 %v29, %v62
    %vm64 = vcmask 0
    %65 = vst.msk [vmem:[#allocation5] sm:$0x1] %vm64, %v63
    // Predicated region
    $region14: #{tpu_custom_call.1} parent=1 // pred_check
      _
    $region15: #{tpu_custom_call.1} parent=1 // pred_check_branch
      %67 = sbr.rel (0) target = $region17
    $region16: #{tpu_custom_call.1} parent=1 // pred_region
      %69 = vsyncadd [#allocation4], 0
      %s71 = sshll.u32 [#allocation5], 4
      %s72 = int_to_ptr.vmem [resolvable:$true] %s71
      %s73 = sshll.u32 %s1, 4
      %s74 = int_to_ptr.hbm [resolvable:$true] %s73
      %76 = dma.vmem_to_hbm [thread:$0]  %s72, 16, %s74, [#allocation4]
    $region17: #{tpu_custom_call.1} parent=1 // pred_fallthru
      _
    // Predicated region
    $region18: #{tpu_custom_call.1} parent=1 // pred_check
      _
    $region19: #{tpu_custom_call.1} parent=1 // pred_check_branch
      %78 = sbr.rel (0) target = $region21
    $region20: #{tpu_custom_call.1} parent=1 // pred_region
      %80 = dma.done [#allocation4], 16
    $region21: #{tpu_custom_call.1} parent=1 // pred_fallthru
      _
    %81 = vsyncpa [#allocation3], 1
    %82 = vsyncpa [#allocation4], 1

</llo_original>
